<compile_context>
chip_gen: v7x
topology: tpu7x:2x2x1
jax: 0.10.0
libtpu: 0.0.40
codegen_flags: <defaults>
</compile_context>

<pallas_src>
import jax
import jax.numpy as jnp
from jax.experimental import pallas as pl
from jax.experimental.pallas import tpu as pltpu

HP = 128    # padded hidden dim (100 -> 128), lives on the sublane axis in-kernel
NOUT = 8    # padded output rows (2 -> 8): one full sublane group, lane-dense store
BIAS_COL = 4  # column of the fused first-layer operand that carries b1


def _mlp_kernel(xt_ref, w1t_ref, w2t_ref, o_ref):
    xt = xt_ref[...]      # (4, TB)   f32, batch along lanes
    w1t = w1t_ref[...]    # (128, 8)  cols 0..3 = W1^T, col 4 = b1 (+ carrier at row 100)
    # fc1 on the VPU (K=4 is far too small for the MXU): 4 FMAs in the
    # transposed orientation.  Weight columns are loop-invariant (128,1) lane
    # broadcasts; x rows are cheap (1,TB) sublane broadcasts.
    hT = (w1t[:, BIAS_COL:BIAS_COL + 1]
          + w1t[:, 0:1] * xt[0:1, :]
          + w1t[:, 1:2] * xt[1:2, :]
          + w1t[:, 2:3] * xt[2:3, :]
          + w1t[:, 3:4] * xt[3:4, :])
    hT = jnp.maximum(hT, 0.0)                 # (128, TB); pad rows stay 0,
                                              # bias-carrier row (100) stays 1.
    # fc2 on the MXU: (8,128) @ (128,TB); column 100 of w2t carries b2 via the
    # carrier row of hT.
    yT = jnp.dot(w2t_ref[...], hT, preferred_element_type=jnp.float32)
    o_ref[...] = yT.astype(o_ref.dtype)       # (8, TB) lane-dense, unmasked store


def net_forward(x, w1, b1, w2, b2, *, tb=4096):
    """relu(x @ w1 + b1) @ w2 + b2 with weights stored as (in, out)."""
    B, K = x.shape              # (B, 4)
    H = w1.shape[1]             # 100
    N = w2.shape[1]             # 2
    f32 = jnp.float32

    # --- Fold biases / build transposed, lane-friendly operands (once, XLA) ---
    # Fused first layer, transposed: (128, 8) with cols 0..3 = W1^T, col 4 = b1.
    w1t = jnp.zeros((HP, 8), f32)
    w1t = w1t.at[:H, :K].set(w1.astype(f32).T)
    w1t = w1t.at[:H, BIAS_COL].set(b1.reshape(-1).astype(f32))
    w1t = w1t.at[H, BIAS_COL].set(1.0)            # bias-carrier row -> hT[100,:] == 1

    # Fused second layer, transposed: (8, 128); column 100 carries b2.
    w2t = jnp.zeros((NOUT, HP), f32)
    w2t = w2t.at[:N, :H].set(w2.astype(f32).T)
    w2t = w2t.at[:N, H].set(b2.reshape(-1).astype(f32))

    # --- Batch tiling: big lane-aligned tiles, no XLA pad for large batches ---
    tb_eff = tb if B >= tb else max(128, ((B + 127) // 128) * 128)
    grid = pl.cdiv(B, tb_eff)
    Bp = grid * tb_eff

    xt = jnp.swapaxes(x.astype(f32), 0, 1)        # (4, B), batch on lanes
    if B < tb_eff:                                # tiny batch: pad one small tile
        xt = jnp.pad(xt, ((0, 0), (0, tb_eff - B)))
    # For B >= tb_eff the partial tail tile is handled by Pallas OOB masking;
    # garbage columns only reach out[:, B:Bp], which is sliced off below.

    out = pl.pallas_call(
        _mlp_kernel,
        out_shape=jax.ShapeDtypeStruct((NOUT, Bp), x.dtype),
        grid_spec=pltpu.PrefetchScalarGridSpec(
            num_scalar_prefetch=0,
            grid=(grid,),
            in_specs=[
                pl.BlockSpec((K, tb_eff), lambda i: (0, i)),   # x^T tile (streams)
                pl.BlockSpec((HP, 8), lambda i: (0, 0)),       # fused W1/b1 (resident)
                pl.BlockSpec((NOUT, HP), lambda i: (0, 0)),    # fused W2/b2 (resident)
            ],
            out_specs=pl.BlockSpec((NOUT, tb_eff), lambda i: (0, i)),
        ),
        compiler_params=pltpu.CompilerParams(
            dimension_semantics=("parallel",)),                # megacore on v7x
    )(xt, w1t, w2t)

    # Tiny (2, B) slice + transpose back to the PyTorch-facing (B, 2) layout.
    return jnp.transpose(out[:N, :B]).astype(x.dtype)


def init_params(key):
    """Deterministic init mirroring torch.nn.Linear default U(-1/sqrt(fan_in), +)."""
    k1, k2, k3, k4 = jax.random.split(key, 4)
    in1, out1 = 4, 100
    in2, out2 = 100, 2
    bound1 = 1.0 / jnp.sqrt(jnp.float32(in1))
    bound2 = 1.0 / jnp.sqrt(jnp.float32(in2))
    # Stored as (in, out) so the forward computes x @ w (torch stores (out, in)).
    w1 = jax.random.uniform(k1, (in1, out1), jnp.float32, -bound1, bound1)
    b1 = jax.random.uniform(k2, (1, out1), jnp.float32, -bound1, bound1)
    w2 = jax.random.uniform(k3, (in2, out2), jnp.float32, -bound2, bound2)
    b2 = jax.random.uniform(k4, (1, out2), jnp.float32, -bound2, bound2)
    return w1, b1, w2, b2


if __name__ == "__main__":
    key = jax.random.PRNGKey(0)
    k_params, k_x1, k_x2, k_x3 = jax.random.split(key, 4)
    w1, b1, w2, b2 = init_params(k_params)

    def ref_fn(xx):
        return jnp.maximum(xx @ w1 + b1, 0.0) @ w2 + b2

    # Small batch -> single small padded tile.
    x = jax.random.normal(k_x1, (8, 4), jnp.float32)
    out = jax.block_until_ready(net_forward(x, w1, b1, w2, b2))
    assert out.shape == (8, 2)
    assert jnp.allclose(out, ref_fn(x), atol=1e-5, rtol=1e-5)

    # Odd batch -> single 640-wide tile with a small pad.
    x2 = jax.random.normal(k_x2, (600, 4), jnp.float32)
    out2 = jax.block_until_ready(net_forward(x2, w1, b1, w2, b2))
    assert out2.shape == (600, 2)
    assert jnp.allclose(out2, ref_fn(x2), atol=1e-5, rtol=1e-5)

    # Multi-tile grid with a partial (masked) tail block, no wrapper-side pad.
    x3 = jax.random.normal(k_x3, (4500, 4), jnp.float32)
    out3 = jax.block_until_ready(net_forward(x3, w1, b1, w2, b2, tb=2048))
    assert out3.shape == (4500, 2)
    assert jnp.allclose(out3, ref_fn(x3), atol=1e-5, rtol=1e-5)

    print("KERNEL_OK")
</pallas_src>

<mosaic_0001>
module attributes {stable_mosaic.version = 11 : i64} {
  func.func @_mlp_kernel(%arg0: i32, %arg1: memref<4x128xf32, #tpu.memory_space<vmem>>, %arg2: memref<128x8xf32, #tpu.memory_space<vmem>>, %arg3: memref<8x128xf32, #tpu.memory_space<vmem>>, %arg4: memref<8x128xf32, #tpu.memory_space<vmem>>) attributes {dimension_semantics = [#tpu.dimension_semantics<parallel>], iteration_bounds = array<i64: 1>, scalar_prefetch = 0 : i64, scratch_operands = 0 : i64, tpu.core_type = #tpu.core_type<tc>, window_params = [{transform_indices = @transform_0, window_bounds = array<i64: 4, 128>}, {pipeline_mode = #tpu.pipeline_mode<synchronous>, transform_indices = @transform_1, window_bounds = array<i64: 128, 8>}, {pipeline_mode = #tpu.pipeline_mode<synchronous>, transform_indices = @transform_2, window_bounds = array<i64: 8, 128>}, {transform_indices = @transform_3, window_bounds = array<i64: 8, 128>}]} {
    %c0 = arith.constant 0 : index
    %c0_0 = arith.constant 0 : index
    %0 = vector.load %arg1[%c0, %c0_0] : memref<4x128xf32, #tpu.memory_space<vmem>>, vector<4x128xf32>
    %c0_1 = arith.constant 0 : index
    %c0_2 = arith.constant 0 : index
    %1 = vector.load %arg2[%c0_1, %c0_2] : memref<128x8xf32, #tpu.memory_space<vmem>>, vector<128x8xf32>
    %2 = vector.extract_strided_slice %1 {offsets = [0, 4], sizes = [128, 1], strides = [1, 1]} : vector<128x8xf32> to vector<128x1xf32>
    %3 = vector.extract_strided_slice %1 {offsets = [0, 0], sizes = [128, 1], strides = [1, 1]} : vector<128x8xf32> to vector<128x1xf32>
    %4 = vector.extract_strided_slice %0 {offsets = [0, 0], sizes = [1, 128], strides = [1, 1]} : vector<4x128xf32> to vector<1x128xf32>
    %5 = vector.broadcast %3 : vector<128x1xf32> to vector<128x128xf32>
    %6 = vector.broadcast %4 : vector<1x128xf32> to vector<128x128xf32>
    %7 = arith.mulf %5, %6 : vector<128x128xf32>
    %8 = vector.broadcast %2 : vector<128x1xf32> to vector<128x128xf32>
    %9 = arith.addf %8, %7 : vector<128x128xf32>
    %10 = vector.extract_strided_slice %1 {offsets = [0, 1], sizes = [128, 1], strides = [1, 1]} : vector<128x8xf32> to vector<128x1xf32>
    %11 = vector.extract_strided_slice %0 {offsets = [1, 0], sizes = [1, 128], strides = [1, 1]} : vector<4x128xf32> to vector<1x128xf32>
    %12 = vector.broadcast %10 : vector<128x1xf32> to vector<128x128xf32>
    %13 = vector.broadcast %11 : vector<1x128xf32> to vector<128x128xf32>
    %14 = arith.mulf %12, %13 : vector<128x128xf32>
    %15 = arith.addf %9, %14 : vector<128x128xf32>
    %16 = vector.extract_strided_slice %1 {offsets = [0, 2], sizes = [128, 1], strides = [1, 1]} : vector<128x8xf32> to vector<128x1xf32>
    %17 = vector.extract_strided_slice %0 {offsets = [2, 0], sizes = [1, 128], strides = [1, 1]} : vector<4x128xf32> to vector<1x128xf32>
    %18 = vector.broadcast %16 : vector<128x1xf32> to vector<128x128xf32>
    %19 = vector.broadcast %17 : vector<1x128xf32> to vector<128x128xf32>
    %20 = arith.mulf %18, %19 : vector<128x128xf32>
    %21 = arith.addf %15, %20 : vector<128x128xf32>
    %22 = vector.extract_strided_slice %1 {offsets = [0, 3], sizes = [128, 1], strides = [1, 1]} : vector<128x8xf32> to vector<128x1xf32>
    %23 = vector.extract_strided_slice %0 {offsets = [3, 0], sizes = [1, 128], strides = [1, 1]} : vector<4x128xf32> to vector<1x128xf32>
    %24 = vector.broadcast %22 : vector<128x1xf32> to vector<128x128xf32>
    %25 = vector.broadcast %23 : vector<1x128xf32> to vector<128x128xf32>
    %26 = arith.mulf %24, %25 : vector<128x128xf32>
    %27 = arith.addf %21, %26 : vector<128x128xf32>
    %cst = arith.constant 0.000000e+00 : f32
    %28 = vector.broadcast %cst : f32 to vector<128x128xf32>
    %29 = arith.maximumf %27, %28 : vector<128x128xf32>
    %c0_3 = arith.constant 0 : index
    %c0_4 = arith.constant 0 : index
    %30 = vector.load %arg3[%c0_3, %c0_4] : memref<8x128xf32, #tpu.memory_space<vmem>>, vector<8x128xf32>
    %cst_5 = arith.constant dense<0.000000e+00> : vector<8x128xf32>
    %31 = tpu.matmul %30, %29, %cst_5 {dimension_numbers = #tpu.dot_dimension_numbers<[1], [0], [0], [1], [0, 0, 1, 1], [], []>} : vector<8x128xf32>, vector<128x128xf32>, vector<8x128xf32> -> vector<8x128xf32>
    %c0_6 = arith.constant 0 : index
    %c0_7 = arith.constant 0 : index
    %32 = vector.load %arg4[%c0_6, %c0_7] : memref<8x128xf32, #tpu.memory_space<vmem>>, vector<8x128xf32>
    tpu.vector_store %arg4[%c0_6, %c0_7], %31 {strides = array<i32>} : memref<8x128xf32, #tpu.memory_space<vmem>>, vector<8x128xf32>,
    return
  }
  func.func @transform_0(%arg0: i32) -> (i32, i32) {
    %c0_i32 = arith.constant 0 : i32
    %c0_i32_0 = arith.constant 0 : i32
    return %c0_i32, %arg0 : i32, i32
  }
  func.func @transform_1(%arg0: i32) -> (i32, i32) {
    %c0_i32 = arith.constant 0 : i32
    %c0_i32_0 = arith.constant 0 : i32
    %c0_i32_1 = arith.constant 0 : i32
    return %c0_i32, %c0_i32_0 : i32, i32
  }
  func.func @transform_2(%arg0: i32) -> (i32, i32) {
    %c0_i32 = arith.constant 0 : i32
    %c0_i32_0 = arith.constant 0 : i32
    %c0_i32_1 = arith.constant 0 : i32
    return %c0_i32, %c0_i32_0 : i32, i32
  }
  func.func @transform_3(%arg0: i32) -> (i32, i32) {
    %c0_i32 = arith.constant 0 : i32
    %c0_i32_0 = arith.constant 0 : i32
    return %c0_i32, %arg0 : i32, i32
  }
}

</mosaic_0001>

<llo_original>
// kernel: tpu_custom_call.1
$region0: #{tpu_custom_call.1}
  #allocation0 [shape = 'u32[]', space=smem, size = 0x4, offset = 0x4, fixed_abs, tag = 'smem constant byte address 0x4 - core index']
  #allocation1 [shape = 'u32[144,128]{1,0:T(1,128)}', space=vmem, size = 0x12000, scoped, tag = 'internal scratch']
  %s0 = inlined_call_operand.vmem [shape: f32[4,128], index: 0, kind: input, shape index: {}]
  %s1 = inlined_call_operand.vmem [shape: f32[128,8], index: 1, kind: input, shape index: {}]
  %s2 = inlined_call_operand.vmem [shape: f32[8,128], index: 2, kind: input, shape index: {}]
  %s3 = inlined_call_operand.hbm [shape: f32[8,128], index: 3, kind: output, shape index: {}]
  %s4 = sld [smem:[#allocation0]]
  $region22: #{tpu_custom_call.1} parent=0
    _
  %s6 = ssub.s32 1, %s4
  %s7 = scalar_select 0, %s6, %s4
  $region1: #{tpu_custom_call.1} parent=0
    #allocation2 [shape = 'u8[4096]{0}', space=vmem, size = 0x1000, scoped, tag = 'output window, operand 0, single buffered']
    #allocation3 [shape = 's32[1]{0}', space=sflag, size = 0x4, scoped, tag = 'scoped memory for tpu_custom_call.1']
    %8 = vsyncpa [#allocation3], 0
    // Predicated region
    $region2: #{tpu_custom_call.1} parent=1 // pred_check
      _
    $region3: #{tpu_custom_call.1} parent=1 // pred_check_branch
      %10 = sbr.rel (0) target = $region5
    $region4: #{tpu_custom_call.1} parent=1 // pred_region
      _
    $region5: #{tpu_custom_call.1} parent=1 // pred_fallthru
      _
    // Predicated region
    $region6: #{tpu_custom_call.1} parent=1 // pred_check
      _
    $region7: #{tpu_custom_call.1} parent=1 // pred_check_branch
      %12 = sbr.rel (0) target = $region9
    $region8: #{tpu_custom_call.1} parent=1 // pred_region
      _
    $region9: #{tpu_custom_call.1} parent=1 // pred_fallthru
      _
    // Predicated region
    $region10: #{tpu_custom_call.1} parent=1 // pred_check
      _
    $region11: #{tpu_custom_call.1} parent=1 // pred_check_branch
      %14 = sbr.rel (0) target = $region13
    $region12: #{tpu_custom_call.1} parent=1 // pred_region
      _
    $region13: #{tpu_custom_call.1} parent=1 // pred_fallthru
      _
    %v15 = vld [vmem:[%s0] sm:$0xf]
    %v16 = vld [vmem:[%s1] sm:$0xff]
    %v17 = vld [vmem:[%s1 + $0x8] sm:$0xff]
    %v18 = vld [vmem:[%s1 + $0x10] sm:$0xff]
    %v19 = vld [vmem:[%s1 + $0x18] sm:$0xff]
    %v20 = vld [vmem:[%s1 + $0x20] sm:$0xff]
    %v21 = vld [vmem:[%s1 + $0x28] sm:$0xff]
    %v22 = vld [vmem:[%s1 + $0x30] sm:$0xff]
    %v23 = vld [vmem:[%s1 + $0x38] sm:$0xff]
    %v24 = vld [vmem:[%s1 + $0x40] sm:$0xff]
    %v25 = vld [vmem:[%s1 + $0x48] sm:$0xff]
    %v26 = vld [vmem:[%s1 + $0x50] sm:$0xff]
    %v27 = vld [vmem:[%s1 + $0x58] sm:$0xff]
    %v28 = vld [vmem:[%s1 + $0x60] sm:$0xff]
    %v29 = vld [vmem:[%s1 + $0x68] sm:$0xff]
    %v30 = vld [vmem:[%s1 + $0x70] sm:$0xff]
    %v31 = vld [vmem:[%s1 + $0x78] sm:$0xff]
    %33 = vset.pattern.permute.xlu0 0
    %34 = vperm.xlu0 %33, %v16
    %v35 = vpop.permute.xlu0 %34
    %38 = vset.pattern.permute.xlu0 0
    %39 = vperm.xlu0 %38, %v17
    %v40 = vpop.permute.xlu0 %39
    %43 = vset.pattern.permute.xlu0 0
    %44 = vperm.xlu0 %43, %v18
    %v45 = vpop.permute.xlu0 %44
    %48 = vset.pattern.permute.xlu0 0
    %49 = vperm.xlu0 %48, %v19
    %v50 = vpop.permute.xlu0 %49
    %53 = vset.pattern.permute.xlu0 0
    %54 = vperm.xlu0 %53, %v20
    %v55 = vpop.permute.xlu0 %54
    %58 = vset.pattern.permute.xlu0 0
    %59 = vperm.xlu0 %58, %v21
    %v60 = vpop.permute.xlu0 %59
    %63 = vset.pattern.permute.xlu0 0
    %64 = vperm.xlu0 %63, %v22
    %v65 = vpop.permute.xlu0 %64
    %68 = vset.pattern.permute.xlu0 0
    %69 = vperm.xlu0 %68, %v23
    %v70 = vpop.permute.xlu0 %69
    %73 = vset.pattern.permute.xlu0 0
    %74 = vperm.xlu0 %73, %v24
    %v75 = vpop.permute.xlu0 %74
    %78 = vset.pattern.permute.xlu0 0
    %79 = vperm.xlu0 %78, %v25
    %v80 = vpop.permute.xlu0 %79
    %83 = vset.pattern.permute.xlu0 0
    %84 = vperm.xlu0 %83, %v26
    %v85 = vpop.permute.xlu0 %84
    %88 = vset.pattern.permute.xlu0 0
    %89 = vperm.xlu0 %88, %v27
    %v90 = vpop.permute.xlu0 %89
    %93 = vset.pattern.permute.xlu0 0
    %94 = vperm.xlu0 %93, %v28
    %v95 = vpop.permute.xlu0 %94
    %98 = vset.pattern.permute.xlu0 0
    %99 = vperm.xlu0 %98, %v29
    %v100 = vpop.permute.xlu0 %99
    %103 = vset.pattern.permute.xlu0 0
    %104 = vperm.xlu0 %103, %v30
    %v105 = vpop.permute.xlu0 %104
    %108 = vset.pattern.permute.xlu0 0
    %109 = vperm.xlu0 %108, %v31
    %v110 = vpop.permute.xlu0 %109
    %v112 = vlaneseq
    %v113 = vshrl.u32 %v112, 7
    %v114 = vsub.s32 0, %v113
    %v115 = vrot.slane %v15, %v114
    %v116 = vmul.f32 %v35, %v115
    %v117 = vmul.f32 %v40, %v115
    %v118 = vmul.f32 %v45, %v115
    %v119 = vmul.f32 %v50, %v115
    %v120 = vmul.f32 %v55, %v115
    %v121 = vmul.f32 %v60, %v115
    %v122 = vmul.f32 %v65, %v115
    %v123 = vmul.f32 %v70, %v115
    %v124 = vmul.f32 %v75, %v115
    %v125 = vmul.f32 %v80, %v115
    %v126 = vmul.f32 %v85, %v115
    %v127 = vmul.f32 %v90, %v115
    %v128 = vmul.f32 %v95, %v115
    %v129 = vmul.f32 %v100, %v115
    %v130 = vmul.f32 %v105, %v115
    %v131 = vmul.f32 %v110, %v115
    %132 = vset.pattern.permute.xlu0 4
    %133 = vperm.xlu0 %132, %v16
    %v134 = vpop.permute.xlu0 %133
    %136 = vset.pattern.permute.xlu0 4
    %137 = vperm.xlu0 %136, %v17
    %v138 = vpop.permute.xlu0 %137
    %140 = vset.pattern.permute.xlu0 4
    %141 = vperm.xlu0 %140, %v18
    %v142 = vpop.permute.xlu0 %141
    %144 = vset.pattern.permute.xlu0 4
    %145 = vperm.xlu0 %144, %v19
    %v146 = vpop.permute.xlu0 %145
    %148 = vset.pattern.permute.xlu0 4
    %149 = vperm.xlu0 %148, %v20
    %v150 = vpop.permute.xlu0 %149
    %152 = vset.pattern.permute.xlu0 4
    %153 = vperm.xlu0 %152, %v21
    %v154 = vpop.permute.xlu0 %153
    %156 = vset.pattern.permute.xlu0 4
    %157 = vperm.xlu0 %156, %v22
    %v158 = vpop.permute.xlu0 %157
    %160 = vset.pattern.permute.xlu0 4
    %161 = vperm.xlu0 %160, %v23
    %v162 = vpop.permute.xlu0 %161
    %164 = vset.pattern.permute.xlu0 4
    %165 = vperm.xlu0 %164, %v24
    %v166 = vpop.permute.xlu0 %165
    %168 = vset.pattern.permute.xlu0 4
    %169 = vperm.xlu0 %168, %v25
    %v170 = vpop.permute.xlu0 %169
    %172 = vset.pattern.permute.xlu0 4
    %173 = vperm.xlu0 %172, %v26
    %v174 = vpop.permute.xlu0 %173
    %176 = vset.pattern.permute.xlu0 4
    %177 = vperm.xlu0 %176, %v27
    %v178 = vpop.permute.xlu0 %177
    %180 = vset.pattern.permute.xlu0 4
    %181 = vperm.xlu0 %180, %v28
    %v182 = vpop.permute.xlu0 %181
    %184 = vset.pattern.permute.xlu0 4
    %185 = vperm.xlu0 %184, %v29
    %v186 = vpop.permute.xlu0 %185
    %188 = vset.pattern.permute.xlu0 4
    %189 = vperm.xlu0 %188, %v30
    %v190 = vpop.permute.xlu0 %189
    %192 = vset.pattern.permute.xlu0 4
    %193 = vperm.xlu0 %192, %v31
    %v194 = vpop.permute.xlu0 %193
    %v196 = vadd.f32 %v134, %v116
    %v197 = vadd.f32 %v138, %v117
    %v198 = vadd.f32 %v142, %v118
    %v199 = vadd.f32 %v146, %v119
    %v200 = vadd.f32 %v150, %v120
    %v201 = vadd.f32 %v154, %v121
    %v202 = vadd.f32 %v158, %v122
    %v203 = vadd.f32 %v162, %v123
    %v204 = vadd.f32 %v166, %v124
    %v205 = vadd.f32 %v170, %v125
    %v206 = vadd.f32 %v174, %v126
    %v207 = vadd.f32 %v178, %v127
    %v208 = vadd.f32 %v182, %v128
    %v209 = vadd.f32 %v186, %v129
    %v210 = vadd.f32 %v190, %v130
    %v211 = vadd.f32 %v194, %v131
    %212 = vset.pattern.permute.xlu0 1
    %213 = vperm.xlu0 %212, %v16
    %v214 = vpop.permute.xlu0 %213
    %216 = vset.pattern.permute.xlu0 1
    %217 = vperm.xlu0 %216, %v17
    %v218 = vpop.permute.xlu0 %217
    %220 = vset.pattern.permute.xlu0 1
    %221 = vperm.xlu0 %220, %v18
    %v222 = vpop.permute.xlu0 %221
    %224 = vset.pattern.permute.xlu0 1
    %225 = vperm.xlu0 %224, %v19
    %v226 = vpop.permute.xlu0 %225
    %228 = vset.pattern.permute.xlu0 1
    %229 = vperm.xlu0 %228, %v20
    %v230 = vpop.permute.xlu0 %229
    %232 = vset.pattern.permute.xlu0 1
    %233 = vperm.xlu0 %232, %v21
    %v234 = vpop.permute.xlu0 %233
    %236 = vset.pattern.permute.xlu0 1
    %237 = vperm.xlu0 %236, %v22
    %v238 = vpop.permute.xlu0 %237
    %240 = vset.pattern.permute.xlu0 1
    %241 = vperm.xlu0 %240, %v23
    %v242 = vpop.permute.xlu0 %241
    %244 = vset.pattern.permute.xlu0 1
    %245 = vperm.xlu0 %244, %v24
    %v246 = vpop.permute.xlu0 %245
    %248 = vset.pattern.permute.xlu0 1
    %249 = vperm.xlu0 %248, %v25
    %v250 = vpop.permute.xlu0 %249
    %252 = vset.pattern.permute.xlu0 1
    %253 = vperm.xlu0 %252, %v26
    %v254 = vpop.permute.xlu0 %253
    %256 = vset.pattern.permute.xlu0 1
    %257 = vperm.xlu0 %256, %v27
    %v258 = vpop.permute.xlu0 %257
    %260 = vset.pattern.permute.xlu0 1
    %261 = vperm.xlu0 %260, %v28
    %v262 = vpop.permute.xlu0 %261
    %264 = vset.pattern.permute.xlu0 1
    %265 = vperm.xlu0 %264, %v29
    %v266 = vpop.permute.xlu0 %265
    %268 = vset.pattern.permute.xlu0 1
    %269 = vperm.xlu0 %268, %v30
    %v270 = vpop.permute.xlu0 %269
    %272 = vset.pattern.permute.xlu0 1
    %273 = vperm.xlu0 %272, %v31
    %v274 = vpop.permute.xlu0 %273
    %v276 = vlaneseq
    %v277 = vshrl.u32 %v276, 7
    %v278 = vsub.s32 1, %v277
    %v279 = vrot.slane %v15, %v278
    %v280 = vmul.f32 %v214, %v279
    %v281 = vmul.f32 %v218, %v279
    %v282 = vmul.f32 %v222, %v279
    %v283 = vmul.f32 %v226, %v279
    %v284 = vmul.f32 %v230, %v279
    %v285 = vmul.f32 %v234, %v279
    %v286 = vmul.f32 %v238, %v279
    %v287 = vmul.f32 %v242, %v279
    %v288 = vmul.f32 %v246, %v279
    %v289 = vmul.f32 %v250, %v279
    %v290 = vmul.f32 %v254, %v279
    %v291 = vmul.f32 %v258, %v279
    %v292 = vmul.f32 %v262, %v279
    %v293 = vmul.f32 %v266, %v279
    %v294 = vmul.f32 %v270, %v279
    %v295 = vmul.f32 %v274, %v279
    %v296 = vadd.f32 %v196, %v280
    %v297 = vadd.f32 %v197, %v281
    %v298 = vadd.f32 %v198, %v282
    %v299 = vadd.f32 %v199, %v283
    %v300 = vadd.f32 %v200, %v284
    %v301 = vadd.f32 %v201, %v285
    %v302 = vadd.f32 %v202, %v286
    %v303 = vadd.f32 %v203, %v287
    %v304 = vadd.f32 %v204, %v288
    %v305 = vadd.f32 %v205, %v289
    %v306 = vadd.f32 %v206, %v290
    %v307 = vadd.f32 %v207, %v291
    %v308 = vadd.f32 %v208, %v292
    %v309 = vadd.f32 %v209, %v293
    %v310 = vadd.f32 %v210, %v294
    %v311 = vadd.f32 %v211, %v295
    %312 = vset.pattern.permute.xlu0 2
    %313 = vperm.xlu0 %312, %v16
    %v314 = vpop.permute.xlu0 %313
    %316 = vset.pattern.permute.xlu0 2
    %317 = vperm.xlu0 %316, %v17
    %v318 = vpop.permute.xlu0 %317
    %320 = vset.pattern.permute.xlu0 2
    %321 = vperm.xlu0 %320, %v18
    %v322 = vpop.permute.xlu0 %321
    %324 = vset.pattern.permute.xlu0 2
    %325 = vperm.xlu0 %324, %v19
    %v326 = vpop.permute.xlu0 %325
    %328 = vset.pattern.permute.xlu0 2
    %329 = vperm.xlu0 %328, %v20
    %v330 = vpop.permute.xlu0 %329
    %332 = vset.pattern.permute.xlu0 2
    %333 = vperm.xlu0 %332, %v21
    %v334 = vpop.permute.xlu0 %333
    %336 = vset.pattern.permute.xlu0 2
    %337 = vperm.xlu0 %336, %v22
    %v338 = vpop.permute.xlu0 %337
    %340 = vset.pattern.permute.xlu0 2
    %341 = vperm.xlu0 %340, %v23
    %v342 = vpop.permute.xlu0 %341
    %344 = vset.pattern.permute.xlu0 2
    %345 = vperm.xlu0 %344, %v24
    %v346 = vpop.permute.xlu0 %345
    %348 = vset.pattern.permute.xlu0 2
    %349 = vperm.xlu0 %348, %v25
    %v350 = vpop.permute.xlu0 %349
    %352 = vset.pattern.permute.xlu0 2
    %353 = vperm.xlu0 %352, %v26
    %v354 = vpop.permute.xlu0 %353
    %356 = vset.pattern.permute.xlu0 2
    %357 = vperm.xlu0 %356, %v27
    %v358 = vpop.permute.xlu0 %357
    %360 = vset.pattern.permute.xlu0 2
    %361 = vperm.xlu0 %360, %v28
    %v362 = vpop.permute.xlu0 %361
    %364 = vset.pattern.permute.xlu0 2
    %365 = vperm.xlu0 %364, %v29
    %v366 = vpop.permute.xlu0 %365
    %368 = vset.pattern.permute.xlu0 2
    %369 = vperm.xlu0 %368, %v30
    %v370 = vpop.permute.xlu0 %369
    %372 = vset.pattern.permute.xlu0 2
    %373 = vperm.xlu0 %372, %v31
    %v374 = vpop.permute.xlu0 %373
    %v376 = vlaneseq
    %v377 = vshrl.u32 %v376, 7
    %v378 = vsub.s32 2, %v377
    %v379 = vrot.slane %v15, %v378
    %v380 = vmul.f32 %v314, %v379
    %v381 = vmul.f32 %v318, %v379
    %v382 = vmul.f32 %v322, %v379
    %v383 = vmul.f32 %v326, %v379
    %v384 = vmul.f32 %v330, %v379
    %v385 = vmul.f32 %v334, %v379
    %v386 = vmul.f32 %v338, %v379
    %v387 = vmul.f32 %v342, %v379
    %v388 = vmul.f32 %v346, %v379
    %v389 = vmul.f32 %v350, %v379
    %v390 = vmul.f32 %v354, %v379
    %v391 = vmul.f32 %v358, %v379
    %v392 = vmul.f32 %v362, %v379
    %v393 = vmul.f32 %v366, %v379
    %v394 = vmul.f32 %v370, %v379
    %v395 = vmul.f32 %v374, %v379
    %v396 = vadd.f32 %v296, %v380
    %v397 = vadd.f32 %v297, %v381
    %v398 = vadd.f32 %v298, %v382
    %v399 = vadd.f32 %v299, %v383
    %v400 = vadd.f32 %v300, %v384
    %v401 = vadd.f32 %v301, %v385
    %v402 = vadd.f32 %v302, %v386
    %v403 = vadd.f32 %v303, %v387
    %v404 = vadd.f32 %v304, %v388
    %v405 = vadd.f32 %v305, %v389
    %v406 = vadd.f32 %v306, %v390
    %v407 = vadd.f32 %v307, %v391
    %v408 = vadd.f32 %v308, %v392
    %v409 = vadd.f32 %v309, %v393
    %v410 = vadd.f32 %v310, %v394
    %v411 = vadd.f32 %v311, %v395
    %412 = vset.pattern.permute.xlu0 3
    %413 = vperm.xlu0 %412, %v16
    %v414 = vpop.permute.xlu0 %413
    %416 = vset.pattern.permute.xlu0 3
    %417 = vperm.xlu0 %416, %v17
    %v418 = vpop.permute.xlu0 %417
    %420 = vset.pattern.permute.xlu0 3
    %421 = vperm.xlu0 %420, %v18
    %v422 = vpop.permute.xlu0 %421
    %424 = vset.pattern.permute.xlu0 3
    %425 = vperm.xlu0 %424, %v19
    %v426 = vpop.permute.xlu0 %425
    %428 = vset.pattern.permute.xlu0 3
    %429 = vperm.xlu0 %428, %v20
    %v430 = vpop.permute.xlu0 %429
    %432 = vset.pattern.permute.xlu0 3
    %433 = vperm.xlu0 %432, %v21
    %v434 = vpop.permute.xlu0 %433
    %436 = vset.pattern.permute.xlu0 3
    %437 = vperm.xlu0 %436, %v22
    %v438 = vpop.permute.xlu0 %437
    %440 = vset.pattern.permute.xlu0 3
    %441 = vperm.xlu0 %440, %v23
    %v442 = vpop.permute.xlu0 %441
    %444 = vset.pattern.permute.xlu0 3
    %445 = vperm.xlu0 %444, %v24
    %v446 = vpop.permute.xlu0 %445
    %448 = vset.pattern.permute.xlu0 3
    %449 = vperm.xlu0 %448, %v25
    %v450 = vpop.permute.xlu0 %449
    %452 = vset.pattern.permute.xlu0 3
    %453 = vperm.xlu0 %452, %v26
    %v454 = vpop.permute.xlu0 %453
    %456 = vset.pattern.permute.xlu0 3
    %457 = vperm.xlu0 %456, %v27
    %v458 = vpop.permute.xlu0 %457
    %460 = vset.pattern.permute.xlu0 3
    %461 = vperm.xlu0 %460, %v28
    %v462 = vpop.permute.xlu0 %461
    %464 = vset.pattern.permute.xlu0 3
    %465 = vperm.xlu0 %464, %v29
    %v466 = vpop.permute.xlu0 %465
    %468 = vset.pattern.permute.xlu0 3
    %469 = vperm.xlu0 %468, %v30
    %v470 = vpop.permute.xlu0 %469
    %472 = vset.pattern.permute.xlu0 3
    %473 = vperm.xlu0 %472, %v31
    %v474 = vpop.permute.xlu0 %473
    %v476 = vlaneseq
    %v477 = vshrl.u32 %v476, 7
    %v478 = vsub.s32 3, %v477
    %v479 = vrot.slane %v15, %v478
    %v480 = vmul.f32 %v414, %v479
    %v481 = vmul.f32 %v418, %v479
    %v482 = vmul.f32 %v422, %v479
    %v483 = vmul.f32 %v426, %v479
    %v484 = vmul.f32 %v430, %v479
    %v485 = vmul.f32 %v434, %v479
    %v486 = vmul.f32 %v438, %v479
    %v487 = vmul.f32 %v442, %v479
    %v488 = vmul.f32 %v446, %v479
    %v489 = vmul.f32 %v450, %v479
    %v490 = vmul.f32 %v454, %v479
    %v491 = vmul.f32 %v458, %v479
    %v492 = vmul.f32 %v462, %v479
    %v493 = vmul.f32 %v466, %v479
    %v494 = vmul.f32 %v470, %v479
    %v495 = vmul.f32 %v474, %v479
    %v496 = vadd.f32 %v396, %v480
    %v497 = vadd.f32 %v397, %v481
    %v498 = vadd.f32 %v398, %v482
    %v499 = vadd.f32 %v399, %v483
    %v500 = vadd.f32 %v400, %v484
    %v501 = vadd.f32 %v401, %v485
    %v502 = vadd.f32 %v402, %v486
    %v503 = vadd.f32 %v403, %v487
    %v504 = vadd.f32 %v404, %v488
    %v505 = vadd.f32 %v405, %v489
    %v506 = vadd.f32 %v406, %v490
    %v507 = vadd.f32 %v407, %v491
    %v508 = vadd.f32 %v408, %v492
    %v509 = vadd.f32 %v409, %v493
    %v510 = vadd.f32 %v410, %v494
    %v511 = vadd.f32 %v411, %v495
    %v512 = vmax.f32 %v496, 0.0
    %v513 = vmax.f32 %v497, 0.0
    %v514 = vmax.f32 %v498, 0.0
    %v515 = vmax.f32 %v499, 0.0
    %v516 = vmax.f32 %v500, 0.0
    %v517 = vmax.f32 %v501, 0.0
    %v518 = vmax.f32 %v502, 0.0
    %v519 = vmax.f32 %v503, 0.0
    %v520 = vmax.f32 %v504, 0.0
    %v521 = vmax.f32 %v505, 0.0
    %v522 = vmax.f32 %v506, 0.0
    %v523 = vmax.f32 %v507, 0.0
    %v524 = vmax.f32 %v508, 0.0
    %v525 = vmax.f32 %v509, 0.0
    %v526 = vmax.f32 %v510, 0.0
    %v527 = vmax.f32 %v511, 0.0
    %v528 = vld [vmem:[%s2] sm:$0xff]
    %529 = vmatprep.subr.mxu0 0.0
    %530 = vmatpush1.msra.mxu0 %v512
    %531 = vmatprep.subr.mxu0 0.0
    %532 = vmatpush1.msra.mxu0 %v513
    %533 = vmatprep.subr.mxu0 0.0
    %534 = vmatpush1.msra.mxu0 %v514
    %535 = vmatprep.subr.mxu0 0.0
    %536 = vmatpush1.msra.mxu0 %v515
    %537 = vmatprep.subr.mxu0 0.0
    %538 = vmatpush1.msra.mxu0 %v516
    %539 = vmatprep.subr.mxu0 0.0
    %540 = vmatpush1.msra.mxu0 %v517
    %541 = vmatprep.subr.mxu0 0.0
    %542 = vmatpush1.msra.mxu0 %v518
    %543 = vmatprep.subr.mxu0 0.0
    %544 = vmatpush1.msra.mxu0 %v519
    %545 = vmatprep.subr.mxu0 0.0
    %546 = vmatpush1.msra.mxu0 %v520
    %547 = vmatprep.subr.mxu0 0.0
    %548 = vmatpush1.msra.mxu0 %v521
    %549 = vmatprep.subr.mxu0 0.0
    %550 = vmatpush1.msra.mxu0 %v522
    %551 = vmatprep.subr.mxu0 0.0
    %552 = vmatpush1.msra.mxu0 %v523
    %553 = vmatprep.subr.mxu0 0.0
    %554 = vmatpush1.msra.mxu0 %v524
    %555 = vmatprep.subr.mxu0 0.0
    %556 = vmatpush1.msra.mxu0 %v525
    %557 = vmatprep.subr.mxu0 0.0
    %558 = vmatpush1.msra.mxu0 %v526
    %559 = vmatprep.subr.mxu0 0.0
    %560 = vmatpush1.msra.mxu0 %v527
    %561 = vmatprep.subr.mxu0 0.0
    %562 = vmatpush1.msra.mxu0 0.0
    %563 = vmatprep.subr.mxu0 0.0
    %564 = vmatpush1.msra.mxu0 0.0
    %565 = vmatprep.subr.mxu0 0.0
    %566 = vmatpush1.msra.mxu0 0.0
    %567 = vmatprep.subr.mxu0 0.0
    %568 = vmatpush1.msra.mxu0 0.0
    %569 = vmatprep.subr.mxu0 0.0
    %570 = vmatpush1.msra.mxu0 0.0
    %571 = vmatprep.subr.mxu0 0.0
    %572 = vmatpush1.msra.mxu0 0.0
    %573 = vmatprep.subr.mxu0 0.0
    %574 = vmatpush1.msra.mxu0 0.0
    %575 = vmatprep.subr.mxu0 0.0
    %576 = vmatpush1.msra.mxu0 0.0
    %577 = vmatprep.subr.mxu0 0.0
    %578 = vmatpush1.msra.mxu0 0.0
    %579 = vmatprep.subr.mxu0 0.0
    %580 = vmatpush1.msra.mxu0 0.0
    %581 = vmatprep.subr.mxu0 0.0
    %582 = vmatpush1.msra.mxu0 0.0
    %583 = vmatprep.subr.mxu0 0.0
    %584 = vmatpush1.msra.mxu0 0.0
    %585 = vmatprep.subr.mxu0 0.0
    %586 = vmatpush1.msra.mxu0 0.0
    %587 = vmatprep.subr.mxu0 0.0
    %588 = vmatpush1.msra.mxu0 0.0
    %589 = vmatprep.subr.mxu0 0.0
    %590 = vmatpush1.msra.mxu0 0.0
    %591 = vmatprep.subr.mxu0 0.0
    %592 = vmatpush1.msra.mxu0 0.0
    %593 = vmatprep.mubr.f32.mxu0 0.0
    %594 = vmatmul.mubr.f32.gmra.mrb[0].mxu0 %v528
    %v595 = vpop.f32.mrb[0].mxu0
    %v596 = vadd.f32 0.0, %v595
    %v597 = vpop.f32.mrb[0].mxu0
    %598 = vdwg.mxu0
    %599 = vst [vmem:[#allocation2] sm:$0xff] %v596
    // Predicated region
    $region14: #{tpu_custom_call.1} parent=1 // pred_check
      _
    $region15: #{tpu_custom_call.1} parent=1 // pred_check_branch
      %601 = sbr.rel (0) target = $region17
    $region16: #{tpu_custom_call.1} parent=1 // pred_region
      %s603 = ssub.s32 128, 128
      %604 = vsyncadd [#allocation3], %s603
      %s606 = sshll.u32 [#allocation2], 4
      %s607 = int_to_ptr.vmem [resolvable:$true] %s606
      %609 = dma.vmem_to_hbm [thread:$0]  %s607, 128, %s3, [#allocation3]
    $region17: #{tpu_custom_call.1} parent=1 // pred_fallthru
      _
    // Predicated region
    $region18: #{tpu_custom_call.1} parent=1 // pred_check
      _
    $region19: #{tpu_custom_call.1} parent=1 // pred_check_branch
      %611 = sbr.rel (0) target = $region21
    $region20: #{tpu_custom_call.1} parent=1 // pred_region
      %612 = dma.done [#allocation3], 128
    $region21: #{tpu_custom_call.1} parent=1 // pred_fallthru
      _
    %613 = vsyncpa [#allocation3], 1

</llo_original>
